<compile_context>
chip_gen: v6e
topology: v6e:2x2x1
jax: 0.10.0
libtpu: 0.0.40
codegen_flags: <defaults>
</compile_context>

<pallas_src>
import numpy as np
import jax
import jax.numpy as jnp
from jax.experimental import pallas as pl
from jax.experimental.pallas import tpu as pltpu  # noqa: F401  (TPU backend)

B = 8
H = W = 4
SP = H * W                       # 16 spatial positions
C0, C1, C2 = 1, 8, 16
F1, F2, NCLS = 40, 20, 10
EPS = 1e-5


# ------------------------- fused kernel -------------------------
def net_kernel(x_ref, w1_ref, s1_ref, w2_ref, s2_ref, w3_ref, s3_ref,
               w4_ref, s4_ref, w5_ref, b5_ref, out_ref):
    # Activations are (batch, features); batch=8 == one sublane group.
    # w*_ref are (in_features, out_features) with BN scale folded into the
    # columns; s*_ref are (1, out_features) fused shifts
    # (bias*scale + beta - mean*scale), broadcast over the batch sublanes.
    a = x_ref[...]                                                      # (B, 16)
    a = jnp.maximum(jnp.dot(a, w1_ref[...],
                            preferred_element_type=jnp.float32)
                    + s1_ref[...], 0.0)                                 # conv1+BN1+ReLU  (B, 128)
    a = jnp.maximum(jnp.dot(a, w2_ref[...],
                            preferred_element_type=jnp.float32)
                    + s2_ref[...], 0.0)                                 # conv2+BN2+ReLU  (B, 256)
    # flatten is a no-op: feature index already equals torch's c*16+h*4+w
    a = jnp.maximum(jnp.dot(a, w3_ref[...],
                            preferred_element_type=jnp.float32)
                    + s3_ref[...], 0.0)                                 # fc1+BN3+ReLU    (B, 40)
    # dropout(p=0.3): identity in eval mode
    a = jnp.maximum(jnp.dot(a, w4_ref[...],
                            preferred_element_type=jnp.float32)
                    + s4_ref[...], 0.0)                                 # fc2+BN4+ReLU    (B, 20)
    # dropout(p=0.3): identity in eval mode
    logits = jnp.dot(a, w5_ref[...],
                     preferred_element_type=jnp.float32) + b5_ref[...]  # fc3             (B, 10)
    m = jnp.max(logits, axis=-1, keepdims=True)                         # softmax over classes
    e = jnp.exp(logits - m)
    inv = pl.reciprocal(jnp.sum(e, axis=-1, keepdims=True), approx=True)  # EUP
    out_ref[...] = e * inv


# ------------------------- one-time host precompute -------------------------
def _bn_scale_shift(gamma, beta, mean, var):
    gamma, beta, mean, var = (np.asarray(a, np.float32) for a in (gamma, beta, mean, var))
    scale = gamma / np.sqrt(var + EPS)
    return scale, beta - mean * scale


def _conv_as_matrix(wt):
    """2x2 'same' conv (torch pads bottom/right for even kernels) as a
    (Cout*SP, Cin*SP) matrix over features indexed c*SP + h*W + w."""
    wt = np.asarray(wt, np.float32)
    cout, cin = wt.shape[0], wt.shape[1]
    T = np.zeros((cout * SP, cin * SP), np.float32)
    for co in range(cout):
        for ci in range(cin):
            for i in range(H):
                for j in range(W):
                    for kh in range(2):
                        for kw in range(2):
                            ii, jj = i + kh, j + kw
                            if ii < H and jj < W:
                                T[co * SP + i * W + j, ci * SP + ii * W + jj] += wt[co, ci, kh, kw]
    return T


def prepare_params(prm):
    """Build device-ready, BN/bias-folded weights once (module init time).
    All weights are stored (in_features, out_features); shifts as (1, out)."""
    sc1, sh1 = _bn_scale_shift(*prm["bn1"])
    sc2, sh2 = _bn_scale_shift(*prm["bn2"])
    sc3, sh3 = _bn_scale_shift(*prm["bn3"])
    sc4, sh4 = _bn_scale_shift(*prm["bn4"])

    t1 = _conv_as_matrix(prm["c1w"])                        # (128, 16)
    t2 = _conv_as_matrix(prm["c2w"])                        # (256, 128)
    b1 = np.asarray(prm["c1b"], np.float32)
    b2 = np.asarray(prm["c2b"], np.float32)

    w1 = (t1 * np.repeat(sc1, SP)[:, None]).T               # (16, 128)
    s1 = np.repeat(b1 * sc1 + sh1, SP)[None, :]              # (1, 128)
    w2 = (t2 * np.repeat(sc2, SP)[:, None]).T               # (128, 256)
    s2 = np.repeat(b2 * sc2 + sh2, SP)[None, :]              # (1, 256)

    wf1 = np.asarray(prm["f1w"], np.float32)                 # (40, 256), torch (out, in)
    wf2 = np.asarray(prm["f2w"], np.float32)                 # (20, 40)
    wf3 = np.asarray(prm["f3w"], np.float32)                 # (10, 20)
    bf1 = np.asarray(prm["f1b"], np.float32)
    bf2 = np.asarray(prm["f2b"], np.float32)
    bf3 = np.asarray(prm["f3b"], np.float32)

    w3 = (wf1 * sc3[:, None]).T                              # (256, 40)
    s3 = (bf1 * sc3 + sh3)[None, :]                          # (1, 40)
    w4 = (wf2 * sc4[:, None]).T                              # (40, 20)
    s4 = (bf2 * sc4 + sh4)[None, :]                          # (1, 20)

    return {
        "w1": jnp.asarray(w1), "s1": jnp.asarray(s1),
        "w2": jnp.asarray(w2), "s2": jnp.asarray(s2),
        "w3": jnp.asarray(w3), "s3": jnp.asarray(s3),
        "w4": jnp.asarray(w4), "s4": jnp.asarray(s4),
        "w5": jnp.asarray(wf3.T), "b5": jnp.asarray(bf3[None, :]),
    }


# ------------------------- jitted forward -------------------------
@jax.jit
def net_forward(x_nchw, p):
    # NCHW (B,1,4,4) -> (batch, features); contiguous reshape, feature index
    # = c*16 + h*4 + w (C0 == 1 so this is just h*4+w).  No transposes.
    x_bf = x_nchw.reshape(B, C0 * SP)                        # (B, 16)
    return pl.pallas_call(
        net_kernel,
        out_shape=jax.ShapeDtypeStruct((B, NCLS), jnp.float32),
    )(x_bf, p["w1"], p["s1"], p["w2"], p["s2"], p["w3"], p["s3"],
      p["w4"], p["s4"], p["w5"], p["b5"])                    # (B, NCLS)


# ------------------------- numpy reference (for sanity) -------------------------
def ref_forward(x_nchw, prm):
    x = np.asarray(x_nchw, np.float64)

    def conv(xin, wgt, bias):
        b_, ci, hh, ww = xin.shape
        xp = np.pad(xin, ((0, 0), (0, 0), (0, 1), (0, 1)))   # 'same' even kernel: pad bottom/right
        out = np.zeros((b_, wgt.shape[0], hh, ww))
        for kh in range(2):
            for kw in range(2):
                out += np.einsum('bchw,oc->bohw',
                                 xp[:, :, kh:kh + hh, kw:kw + ww], wgt[:, :, kh, kw])
        return out + bias[None, :, None, None]

    def bn(xin, g, bta, m, v):
        shp = (1, -1) + (1,) * (xin.ndim - 2)
        return (xin - m.reshape(shp)) / np.sqrt(v.reshape(shp) + EPS) * g.reshape(shp) + bta.reshape(shp)

    a = np.maximum(bn(conv(x, np.asarray(prm["c1w"], np.float64), np.asarray(prm["c1b"], np.float64)),
                      *[np.asarray(p, np.float64) for p in prm["bn1"]]), 0)
    a = np.maximum(bn(conv(a, np.asarray(prm["c2w"], np.float64), np.asarray(prm["c2b"], np.float64)),
                      *[np.asarray(p, np.float64) for p in prm["bn2"]]), 0)
    a = a.reshape(B, -1)
    a = np.maximum(bn(a @ np.asarray(prm["f1w"], np.float64).T + np.asarray(prm["f1b"], np.float64),
                      *[np.asarray(p, np.float64) for p in prm["bn3"]]), 0)
    a = np.maximum(bn(a @ np.asarray(prm["f2w"], np.float64).T + np.asarray(prm["f2b"], np.float64),
                      *[np.asarray(p, np.float64) for p in prm["bn4"]]), 0)
    logits = a @ np.asarray(prm["f3w"], np.float64).T + np.asarray(prm["f3b"], np.float64)
    e = np.exp(logits - logits.max(1, keepdims=True))
    return e / e.sum(1, keepdims=True)


if __name__ == "__main__":
    key = jax.random.PRNGKey(0)
    ks = jax.random.split(key, 32)

    def u(k, shape, fan_in):
        bound = 1.0 / np.sqrt(fan_in)
        return jax.random.uniform(k, shape, jnp.float32, -bound, bound)

    def bn_init(k4, c):
        kg, kb, km, kv = jax.random.split(k4, 4)
        gamma = jax.random.uniform(kg, (c,), jnp.float32, 0.5, 1.5)
        beta = jax.random.uniform(kb, (c,), jnp.float32, -0.5, 0.5)
        mean = jax.random.uniform(km, (c,), jnp.float32, -0.5, 0.5)
        var = jax.random.uniform(kv, (c,), jnp.float32, 0.5, 1.5)
        return (np.asarray(gamma), np.asarray(beta), np.asarray(mean), np.asarray(var))

    prm = {
        "c1w": u(ks[0], (C1, C0, 2, 2), C0 * 4), "c1b": u(ks[1], (C1,), C0 * 4),
        "c2w": u(ks[2], (C2, C1, 2, 2), C1 * 4), "c2b": u(ks[3], (C2,), C1 * 4),
        "f1w": u(ks[4], (F1, H * W * C2), H * W * C2), "f1b": u(ks[5], (F1,), H * W * C2),
        "f2w": u(ks[6], (F2, F1), F1), "f2b": u(ks[7], (F2,), F1),
        "f3w": u(ks[8], (NCLS, F2), F2), "f3b": u(ks[9], (NCLS,), F2),
        "bn1": bn_init(ks[10], C1), "bn2": bn_init(ks[11], C2),
        "bn3": bn_init(ks[12], F1), "bn4": bn_init(ks[13], F2),
    }

    x = jax.random.normal(ks[20], (B, C0, H, W), jnp.float32)   # NCHW, like torch

    params = prepare_params(prm)           # one-time host precompute
    out = net_forward(x, params)           # single fused Pallas kernel
    out = jax.block_until_ready(out)

    ref = ref_forward(np.asarray(x), prm)
    np.testing.assert_allclose(np.asarray(out), ref, rtol=0, atol=2e-2)
    assert np.allclose(np.asarray(out).sum(axis=1), 1.0, atol=5e-3)

    print("KERNEL_OK")
</pallas_src>

<mosaic_0001>
module attributes {stable_mosaic.version = 11 : i64} {
  func.func @net_kernel(%arg0: memref<8x16xf32, #tpu.memory_space<vmem>>, %arg1: memref<16x128xf32, #tpu.memory_space<vmem>>, %arg2: memref<1x128xf32, #tpu.memory_space<vmem>>, %arg3: memref<128x256xf32, #tpu.memory_space<vmem>>, %arg4: memref<1x256xf32, #tpu.memory_space<vmem>>, %arg5: memref<256x40xf32, #tpu.memory_space<vmem>>, %arg6: memref<1x40xf32, #tpu.memory_space<vmem>>, %arg7: memref<40x20xf32, #tpu.memory_space<vmem>>, %arg8: memref<1x20xf32, #tpu.memory_space<vmem>>, %arg9: memref<20x10xf32, #tpu.memory_space<vmem>>, %arg10: memref<1x10xf32, #tpu.memory_space<vmem>>, %arg11: memref<8x10xf32, #tpu.memory_space<vmem>>) attributes {dimension_semantics = [], scalar_prefetch = 0 : i64, scratch_operands = 0 : i64, tpu.core_type = #tpu.core_type<tc>} {
    %c0 = arith.constant 0 : index
    %c0_0 = arith.constant 0 : index
    %0 = vector.load %arg0[%c0, %c0_0] : memref<8x16xf32, #tpu.memory_space<vmem>>, vector<8x16xf32>
    %c0_1 = arith.constant 0 : index
    %c0_2 = arith.constant 0 : index
    %1 = vector.load %arg1[%c0_1, %c0_2] : memref<16x128xf32, #tpu.memory_space<vmem>>, vector<16x128xf32>
    %cst = arith.constant dense<0.000000e+00> : vector<8x128xf32>
    %2 = tpu.matmul %0, %1, %cst {dimension_numbers = #tpu.dot_dimension_numbers<[1], [0], [0], [1], [0, 0, 1, 1], [], []>} : vector<8x16xf32>, vector<16x128xf32>, vector<8x128xf32> -> vector<8x128xf32>
    %c0_3 = arith.constant 0 : index
    %c0_4 = arith.constant 0 : index
    %3 = vector.load %arg2[%c0_3, %c0_4] : memref<1x128xf32, #tpu.memory_space<vmem>>, vector<1x128xf32>
    %4 = vector.broadcast %3 : vector<1x128xf32> to vector<8x128xf32>
    %5 = arith.addf %2, %4 : vector<8x128xf32>
    %cst_5 = arith.constant 0.000000e+00 : f32
    %6 = vector.broadcast %cst_5 : f32 to vector<8x128xf32>
    %7 = arith.maximumf %5, %6 : vector<8x128xf32>
    %c0_6 = arith.constant 0 : index
    %c0_7 = arith.constant 0 : index
    %8 = vector.load %arg3[%c0_6, %c0_7] : memref<128x256xf32, #tpu.memory_space<vmem>>, vector<128x256xf32>
    %cst_8 = arith.constant dense<0.000000e+00> : vector<8x256xf32>
    %9 = tpu.matmul %7, %8, %cst_8 {dimension_numbers = #tpu.dot_dimension_numbers<[1], [0], [0], [1], [0, 0, 1, 1], [], []>} : vector<8x128xf32>, vector<128x256xf32>, vector<8x256xf32> -> vector<8x256xf32>
    %c0_9 = arith.constant 0 : index
    %c0_10 = arith.constant 0 : index
    %10 = vector.load %arg4[%c0_9, %c0_10] : memref<1x256xf32, #tpu.memory_space<vmem>>, vector<1x256xf32>
    %11 = vector.broadcast %10 : vector<1x256xf32> to vector<8x256xf32>
    %12 = arith.addf %9, %11 : vector<8x256xf32>
    %cst_11 = arith.constant 0.000000e+00 : f32
    %13 = vector.broadcast %cst_11 : f32 to vector<8x256xf32>
    %14 = arith.maximumf %12, %13 : vector<8x256xf32>
    %c0_12 = arith.constant 0 : index
    %c0_13 = arith.constant 0 : index
    %15 = vector.load %arg5[%c0_12, %c0_13] : memref<256x40xf32, #tpu.memory_space<vmem>>, vector<256x40xf32>
    %cst_14 = arith.constant dense<0.000000e+00> : vector<8x40xf32>
    %16 = tpu.matmul %14, %15, %cst_14 {dimension_numbers = #tpu.dot_dimension_numbers<[1], [0], [0], [1], [0, 0, 1, 1], [], []>} : vector<8x256xf32>, vector<256x40xf32>, vector<8x40xf32> -> vector<8x40xf32>
    %c0_15 = arith.constant 0 : index
    %c0_16 = arith.constant 0 : index
    %17 = vector.load %arg6[%c0_15, %c0_16] : memref<1x40xf32, #tpu.memory_space<vmem>>, vector<1x40xf32>
    %18 = vector.broadcast %17 : vector<1x40xf32> to vector<8x40xf32>
    %19 = arith.addf %16, %18 : vector<8x40xf32>
    %cst_17 = arith.constant 0.000000e+00 : f32
    %20 = vector.broadcast %cst_17 : f32 to vector<8x40xf32>
    %21 = arith.maximumf %19, %20 : vector<8x40xf32>
    %c0_18 = arith.constant 0 : index
    %c0_19 = arith.constant 0 : index
    %22 = vector.load %arg7[%c0_18, %c0_19] : memref<40x20xf32, #tpu.memory_space<vmem>>, vector<40x20xf32>
    %cst_20 = arith.constant dense<0.000000e+00> : vector<8x20xf32>
    %23 = tpu.matmul %21, %22, %cst_20 {dimension_numbers = #tpu.dot_dimension_numbers<[1], [0], [0], [1], [0, 0, 1, 1], [], []>} : vector<8x40xf32>, vector<40x20xf32>, vector<8x20xf32> -> vector<8x20xf32>
    %c0_21 = arith.constant 0 : index
    %c0_22 = arith.constant 0 : index
    %24 = vector.load %arg8[%c0_21, %c0_22] : memref<1x20xf32, #tpu.memory_space<vmem>>, vector<1x20xf32>
    %25 = vector.broadcast %24 : vector<1x20xf32> to vector<8x20xf32>
    %26 = arith.addf %23, %25 : vector<8x20xf32>
    %cst_23 = arith.constant 0.000000e+00 : f32
    %27 = vector.broadcast %cst_23 : f32 to vector<8x20xf32>
    %28 = arith.maximumf %26, %27 : vector<8x20xf32>
    %c0_24 = arith.constant 0 : index
    %c0_25 = arith.constant 0 : index
    %29 = vector.load %arg9[%c0_24, %c0_25] : memref<20x10xf32, #tpu.memory_space<vmem>>, vector<20x10xf32>
    %cst_26 = arith.constant dense<0.000000e+00> : vector<8x10xf32>
    %30 = tpu.matmul %28, %29, %cst_26 {dimension_numbers = #tpu.dot_dimension_numbers<[1], [0], [0], [1], [0, 0, 1, 1], [], []>} : vector<8x20xf32>, vector<20x10xf32>, vector<8x10xf32> -> vector<8x10xf32>
    %c0_27 = arith.constant 0 : index
    %c0_28 = arith.constant 0 : index
    %31 = vector.load %arg10[%c0_27, %c0_28] : memref<1x10xf32, #tpu.memory_space<vmem>>, vector<1x10xf32>
    %32 = vector.broadcast %31 : vector<1x10xf32> to vector<8x10xf32>
    %33 = arith.addf %30, %32 : vector<8x10xf32>
    %cst_29 = arith.constant dense<0xFF800000> : vector<8xf32>
    %34 = vector.multi_reduction <maximumf>, %33, %cst_29 [1] : vector<8x10xf32> to vector<8xf32>
    %35 = vector.shape_cast %34 : vector<8xf32> to vector<8x1xf32>
    %36 = vector.broadcast %35 : vector<8x1xf32> to vector<8x10xf32>
    %37 = arith.subf %33, %36 : vector<8x10xf32>
    %38 = math.exp %37 : vector<8x10xf32>
    %cst_30 = arith.constant dense<0.000000e+00> : vector<8xf32>
    %39 = vector.multi_reduction <add>, %38, %cst_30 [1] : vector<8x10xf32> to vector<8xf32>
    %40 = vector.shape_cast %39 : vector<8xf32> to vector<8x1xf32>
    %41 = tpu.reciprocal %40 {approx = true} : vector<8x1xf32> -> vector<8x1xf32>
    %42 = vector.broadcast %41 : vector<8x1xf32> to vector<8x10xf32>
    %43 = arith.mulf %38, %42 : vector<8x10xf32>
    %c0_31 = arith.constant 0 : index
    %c0_32 = arith.constant 0 : index
    %44 = vector.load %arg11[%c0_31, %c0_32] : memref<8x10xf32, #tpu.memory_space<vmem>>, vector<8x10xf32>
    tpu.vector_store %arg11[%c0_31, %c0_32], %43 {strides = array<i32>} : memref<8x10xf32, #tpu.memory_space<vmem>>, vector<8x10xf32>,
    return
  }
}

</mosaic_0001>

<llo_original>
// kernel: net_forward.1
$region0: #{net_forward.1}
  #allocation0 [shape = 'u32[]', space=smem, size = 0x4, offset = 0x4, fixed_abs, tag = 'smem constant byte address 0x4 - core index']
  #allocation1 [shape = 'u32[144,128]{1,0:T(1,128)}', space=vmem, size = 0x12000, scoped, tag = 'internal scratch']
  %s0 = inlined_call_operand.vmem [shape: f32[8,16], index: 0, kind: input, shape index: {}]
  %s1 = inlined_call_operand.vmem [shape: f32[16,128], index: 1, kind: input, shape index: {}]
  %s2 = inlined_call_operand.vmem [shape: f32[1,128], index: 2, kind: input, shape index: {}]
  %s3 = inlined_call_operand.vmem [shape: f32[128,256], index: 3, kind: input, shape index: {}]
  %s4 = inlined_call_operand.vmem [shape: f32[1,256], index: 4, kind: input, shape index: {}]
  %s5 = inlined_call_operand.vmem [shape: f32[256,40], index: 5, kind: input, shape index: {}]
  %s6 = inlined_call_operand.vmem [shape: f32[1,40], index: 6, kind: input, shape index: {}]
  %s7 = inlined_call_operand.vmem [shape: f32[40,20], index: 7, kind: input, shape index: {}]
  %s8 = inlined_call_operand.vmem [shape: f32[1,20], index: 8, kind: input, shape index: {}]
  %s9 = inlined_call_operand.vmem [shape: f32[20,10], index: 9, kind: input, shape index: {}]
  %s10 = inlined_call_operand.vmem [shape: f32[1,10], index: 10, kind: input, shape index: {}]
  %s11 = inlined_call_operand.hbm [shape: f32[8,10], index: 11, kind: output, shape index: {}]
  %s12 = sld [smem:[#allocation0]]
  $region54: #{net_forward.1} parent=0
    _
  %s14 = ssub.s32 1, %s12
  %s15 = scalar_select 0, %s14, %s12
  $region1: #{net_forward.1} parent=0
    #allocation2 [shape = 'u8[4096]{0}', space=vmem, size = 0x1000, scoped, tag = 'output window, operand 0, single buffered']
    #allocation3 [shape = 's32[1]{0}', space=sflag, size = 0x4, scoped, tag = 'scoped memory for net_forward.1']
    %16 = vsyncpa [#allocation3], 0
    // Predicated region
    $region2: #{net_forward.1} parent=1 // pred_check
      _
    $region3: #{net_forward.1} parent=1 // pred_check_branch
      %18 = sbr.rel (0) target = $region5
    $region4: #{net_forward.1} parent=1 // pred_region
      _
    $region5: #{net_forward.1} parent=1 // pred_fallthru
      _
    // Predicated region
    $region6: #{net_forward.1} parent=1 // pred_check
      _
    $region7: #{net_forward.1} parent=1 // pred_check_branch
      %20 = sbr.rel (0) target = $region9
    $region8: #{net_forward.1} parent=1 // pred_region
      _
    $region9: #{net_forward.1} parent=1 // pred_fallthru
      _
    // Predicated region
    $region10: #{net_forward.1} parent=1 // pred_check
      _
    $region11: #{net_forward.1} parent=1 // pred_check_branch
      %22 = sbr.rel (0) target = $region13
    $region12: #{net_forward.1} parent=1 // pred_region
      _
    $region13: #{net_forward.1} parent=1 // pred_fallthru
      _
    // Predicated region
    $region14: #{net_forward.1} parent=1 // pred_check
      _
    $region15: #{net_forward.1} parent=1 // pred_check_branch
      %24 = sbr.rel (0) target = $region17
    $region16: #{net_forward.1} parent=1 // pred_region
      _
    $region17: #{net_forward.1} parent=1 // pred_fallthru
      _
    // Predicated region
    $region18: #{net_forward.1} parent=1 // pred_check
      _
    $region19: #{net_forward.1} parent=1 // pred_check_branch
      %26 = sbr.rel (0) target = $region21
    $region20: #{net_forward.1} parent=1 // pred_region
      _
    $region21: #{net_forward.1} parent=1 // pred_fallthru
      _
    // Predicated region
    $region22: #{net_forward.1} parent=1 // pred_check
      _
    $region23: #{net_forward.1} parent=1 // pred_check_branch
      %28 = sbr.rel (0) target = $region25
    $region24: #{net_forward.1} parent=1 // pred_region
      _
    $region25: #{net_forward.1} parent=1 // pred_fallthru
      _
    // Predicated region
    $region26: #{net_forward.1} parent=1 // pred_check
      _
    $region27: #{net_forward.1} parent=1 // pred_check_branch
      %30 = sbr.rel (0) target = $region29
    $region28: #{net_forward.1} parent=1 // pred_region
      _
    $region29: #{net_forward.1} parent=1 // pred_fallthru
      _
    // Predicated region
    $region30: #{net_forward.1} parent=1 // pred_check
      _
    $region31: #{net_forward.1} parent=1 // pred_check_branch
      %32 = sbr.rel (0) target = $region33
    $region32: #{net_forward.1} parent=1 // pred_region
      _
    $region33: #{net_forward.1} parent=1 // pred_fallthru
      _
    // Predicated region
    $region34: #{net_forward.1} parent=1 // pred_check
      _
    $region35: #{net_forward.1} parent=1 // pred_check_branch
      %34 = sbr.rel (0) target = $region37
    $region36: #{net_forward.1} parent=1 // pred_region
      _
    $region37: #{net_forward.1} parent=1 // pred_fallthru
      _
    // Predicated region
    $region38: #{net_forward.1} parent=1 // pred_check
      _
    $region39: #{net_forward.1} parent=1 // pred_check_branch
      %36 = sbr.rel (0) target = $region41
    $region40: #{net_forward.1} parent=1 // pred_region
      _
    $region41: #{net_forward.1} parent=1 // pred_fallthru
      _
    // Predicated region
    $region42: #{net_forward.1} parent=1 // pred_check
      _
    $region43: #{net_forward.1} parent=1 // pred_check_branch
      %38 = sbr.rel (0) target = $region45
    $region44: #{net_forward.1} parent=1 // pred_region
      _
    $region45: #{net_forward.1} parent=1 // pred_fallthru
      _
    %v39 = vld [vmem:[%s0] sm:$0xff]
    %v40 = vld [vmem:[%s1] sm:$0xff]
    %v41 = vld [vmem:[%s1 + $0x8] sm:$0xff]
    %v42 = vld [vmem:[%s2] sm:$0x1]
    %v44 = vlaneseq
    %v45 = vshrl.u32 %v44, 7
    %v46 = vsub.s32 0, %v45
    %v47 = vrot.slane %v42, %v46
    %vm49 = vcmask 130048
    %v51 = vsel %vm49, %v39, 0
    %53 = vmatprep.subr.mxu0 0.0
    %54 = vmatpush1.msra.mxu0 0.0
    %55 = vmatprep.subr.mxu0 0.0
    %56 = vmatpush1.msra.mxu0 0.0
    %57 = vmatprep.subr.mxu0 0.0
    %58 = vmatpush1.msra.mxu0 0.0
    %59 = vmatprep.subr.mxu0 0.0
    %60 = vmatpush1.msra.mxu0 0.0
    %61 = vmatprep.subr.mxu0 0.0
    %62 = vmatpush1.msra.mxu0 0.0
    %63 = vmatprep.subr.mxu0 0.0
    %64 = vmatpush1.msra.mxu0 0.0
    %65 = vmatprep.subr.mxu0 0.0
    %66 = vmatpush1.msra.mxu0 0.0
    %67 = vmatprep.subr.mxu0 0.0
    %68 = vmatpush1.msra.mxu0 0.0
    %69 = vmatprep.subr.mxu0 0.0
    %70 = vmatpush1.msra.mxu0 0.0
    %71 = vmatprep.subr.mxu0 0.0
    %72 = vmatpush1.msra.mxu0 0.0
    %73 = vmatprep.subr.mxu0 0.0
    %74 = vmatpush1.msra.mxu0 0.0
    %75 = vmatprep.subr.mxu0 0.0
    %76 = vmatpush1.msra.mxu0 0.0
    %77 = vmatprep.subr.mxu0 0.0
    %78 = vmatpush1.msra.mxu0 0.0
    %79 = vmatprep.subr.mxu0 0.0
    %80 = vmatpush1.msra.mxu0 0.0
    %81 = vmatprep.subr.mxu0 0.0
    %82 = vmatpush1.msra.mxu0 %v41
    %83 = vmatprep.subr.mxu0 0.0
    %84 = vmatpush1.msra.mxu0 %v40
    %85 = vmatprep.subr.mxu0 0.0
    %86 = vmatpush2.msra.mxu0 0.0
    %87 = vmatprep.subr.mxu0 0.0
    %88 = vmatpush2.msra.mxu0 0.0
    %89 = vmatprep.subr.mxu0 0.0
    %90 = vmatpush2.msra.mxu0 0.0
    %91 = vmatprep.subr.mxu0 0.0
    %92 = vmatpush2.msra.mxu0 0.0
    %93 = vmatprep.subr.mxu0 0.0
    %94 = vmatpush2.msra.mxu0 0.0
    %95 = vmatprep.subr.mxu0 0.0
    %96 = vmatpush2.msra.mxu0 0.0
    %97 = vmatprep.subr.mxu0 0.0
    %98 = vmatpush2.msra.mxu0 0.0
    %99 = vmatprep.subr.mxu0 0.0
    %100 = vmatpush2.msra.mxu0 0.0
    %101 = vmatprep.subr.mxu0 0.0
    %102 = vmatpush2.msra.mxu0 0.0
    %103 = vmatprep.subr.mxu0 0.0
    %104 = vmatpush2.msra.mxu0 0.0
    %105 = vmatprep.subr.mxu0 0.0
    %106 = vmatpush2.msra.mxu0 0.0
    %107 = vmatprep.subr.mxu0 0.0
    %108 = vmatpush2.msra.mxu0 0.0
    %109 = vmatprep.subr.mxu0 0.0
    %110 = vmatpush2.msra.mxu0 0.0
    %111 = vmatprep.subr.mxu0 0.0
    %112 = vmatpush2.msra.mxu0 0.0
    %113 = vmatprep.subr.mxu0 0.0
    %114 = vmatpush2.msra.mxu0 0.0
    %115 = vmatprep.subr.mxu0 0.0
    %116 = vmatpush2.msra.mxu0 0.0
    %117 = vmatprep.mubr.f32.mxu0 0.0
    %118 = vmatmul.mubr.f32.gmra.mxu0 %v51
    %v119 = vpop.f32.mrf.mxu0
    %v120 = vadd.f32 %v47, %v119
    %v121 = vpop.f32.mrf.mxu0
    %122 = vdwg.mxu0
    %v123 = vmax.f32 %v120, 0.0
    %v124 = vld [vmem:[%s3] sm:$0xff]
    %v125 = vld [vmem:[%s3 + $0x8] sm:$0xff]
    %v126 = vld [vmem:[%s3 + $0x10] sm:$0xff]
    %v127 = vld [vmem:[%s3 + $0x18] sm:$0xff]
    %v128 = vld [vmem:[%s3 + $0x20] sm:$0xff]
    %v129 = vld [vmem:[%s3 + $0x28] sm:$0xff]
    %v130 = vld [vmem:[%s3 + $0x30] sm:$0xff]
    %v131 = vld [vmem:[%s3 + $0x38] sm:$0xff]
    %v132 = vld [vmem:[%s3 + $0x40] sm:$0xff]
    %v133 = vld [vmem:[%s3 + $0x48] sm:$0xff]
    %v134 = vld [vmem:[%s3 + $0x50] sm:$0xff]
    %v135 = vld [vmem:[%s3 + $0x58] sm:$0xff]
    %v136 = vld [vmem:[%s3 + $0x60] sm:$0xff]
    %v137 = vld [vmem:[%s3 + $0x68] sm:$0xff]
    %v138 = vld [vmem:[%s3 + $0x70] sm:$0xff]
    %v139 = vld [vmem:[%s3 + $0x78] sm:$0xff]
    %v140 = vld [vmem:[%s3 + $0x80] sm:$0xff]
    %v141 = vld [vmem:[%s3 + $0x88] sm:$0xff]
    %v142 = vld [vmem:[%s3 + $0x90] sm:$0xff]
    %v143 = vld [vmem:[%s3 + $0x98] sm:$0xff]
    %v144 = vld [vmem:[%s3 + $0xa0] sm:$0xff]
    %v145 = vld [vmem:[%s3 + $0xa8] sm:$0xff]
    %v146 = vld [vmem:[%s3 + $0xb0] sm:$0xff]
    %v147 = vld [vmem:[%s3 + $0xb8] sm:$0xff]
    %v148 = vld [vmem:[%s3 + $0xc0] sm:$0xff]
    %v149 = vld [vmem:[%s3 + $0xc8] sm:$0xff]
    %v150 = vld [vmem:[%s3 + $0xd0] sm:$0xff]
    %v151 = vld [vmem:[%s3 + $0xd8] sm:$0xff]
    %v152 = vld [vmem:[%s3 + $0xe0] sm:$0xff]
    %v153 = vld [vmem:[%s3 + $0xe8] sm:$0xff]
    %v154 = vld [vmem:[%s3 + $0xf0] sm:$0xff]
    %v155 = vld [vmem:[%s3 + $0xf8] sm:$0xff]
    %v156 = vld [vmem:[%s4] sm:$0x3]
    %v158 = vlaneseq
    %v159 = vshrl.u32 %v158, 7
    %v160 = vsub.s32 0, %v159
    %v161 = vrot.slane %v156, %v160
    %v162 = vlaneseq
    %v163 = vshrl.u32 %v162, 7
    %v164 = vsub.s32 1, %v163
    %v165 = vrot.slane %v156, %v164
    %168 = vmatprep.subr.mxu0 %v155
    %169 = vmatpush1.msra.mxu0 %v154
    %170 = vmatprep.subr.mxu0 %v153
    %171 = vmatpush1.msra.mxu0 %v152
    %172 = vmatprep.subr.mxu0 %v151
    %173 = vmatpush1.msra.mxu0 %v150
    %174 = vmatprep.subr.mxu0 %v149
    %175 = vmatpush1.msra.mxu0 %v148
    %176 = vmatprep.subr.mxu0 %v147
    %177 = vmatpush1.msra.mxu0 %v146
    %178 = vmatprep.subr.mxu0 %v145
    %179 = vmatpush1.msra.mxu0 %v144
    %180 = vmatprep.subr.mxu0 %v143
    %181 = vmatpush1.msra.mxu0 %v142
    %182 = vmatprep.subr.mxu0 %v141
    %183 = vmatpush1.msra.mxu0 %v140
    %184 = vmatprep.subr.mxu0 %v139
    %185 = vmatpush1.msra.mxu0 %v138
    %186 = vmatprep.subr.mxu0 %v137
    %187 = vmatpush1.msra.mxu0 %v136
    %188 = vmatprep.subr.mxu0 %v135
    %189 = vmatpush1.msra.mxu0 %v134
    %190 = vmatprep.subr.mxu0 %v133
    %191 = vmatpush1.msra.mxu0 %v132
    %192 = vmatprep.subr.mxu0 %v131
    %193 = vmatpush1.msra.mxu0 %v130
    %194 = vmatprep.subr.mxu0 %v129
    %195 = vmatpush1.msra.mxu0 %v128
    %196 = vmatprep.subr.mxu0 %v127
    %197 = vmatpush1.msra.mxu0 %v126
    %198 = vmatprep.subr.mxu0 %v125
    %199 = vmatpush1.msra.mxu0 %v124
    %200 = vmatprep.subr.mxu0 0.0
    %201 = vmatpush2.msra.mxu0 0.0
    %202 = vmatprep.subr.mxu0 0.0
    %203 = vmatpush2.msra.mxu0 0.0
    %204 = vmatprep.subr.mxu0 0.0
    %205 = vmatpush2.msra.mxu0 0.0
    %206 = vmatprep.subr.mxu0 0.0
    %207 = vmatpush2.msra.mxu0 0.0
    %208 = vmatprep.subr.mxu0 0.0
    %209 = vmatpush2.msra.mxu0 0.0
    %210 = vmatprep.subr.mxu0 0.0
    %211 = vmatpush2.msra.mxu0 0.0
    %212 = vmatprep.subr.mxu0 0.0
    %213 = vmatpush2.msra.mxu0 0.0
    %214 = vmatprep.subr.mxu0 0.0
    %215 = vmatpush2.msra.mxu0 0.0
    %216 = vmatprep.subr.mxu0 0.0
    %217 = vmatpush2.msra.mxu0 0.0
    %218 = vmatprep.subr.mxu0 0.0
    %219 = vmatpush2.msra.mxu0 0.0
    %220 = vmatprep.subr.mxu0 0.0
    %221 = vmatpush2.msra.mxu0 0.0
    %222 = vmatprep.subr.mxu0 0.0
    %223 = vmatpush2.msra.mxu0 0.0
    %224 = vmatprep.subr.mxu0 0.0
    %225 = vmatpush2.msra.mxu0 0.0
    %226 = vmatprep.subr.mxu0 0.0
    %227 = vmatpush2.msra.mxu0 0.0
    %228 = vmatprep.subr.mxu0 0.0
    %229 = vmatpush2.msra.mxu0 0.0
    %230 = vmatprep.subr.mxu0 0.0
    %231 = vmatpush2.msra.mxu0 0.0
    %232 = vmatprep.mubr.f32.mxu0 0.0
    %233 = vmatmul.mubr.f32.gmra.mxu0 %v123
    %v234 = vpop.f32.mrf.mxu0
    %v235 = vadd.f32 %v161, %v234
    %v236 = vpop.f32.mrf.mxu0
    %v237 = vadd.f32 %v165, %v236
    %238 = vdwg.mxu0
    %v239 = vmax.f32 %v235, 0.0
    %v240 = vmax.f32 %v237, 0.0
    %v241 = vld [vmem:[%s5] sm:$0xff]
    %v242 = vld [vmem:[%s5 + $0x8] sm:$0xff]
    %v243 = vld [vmem:[%s5 + $0x10] sm:$0xff]
    %v244 = vld [vmem:[%s5 + $0x18] sm:$0xff]
    %v245 = vld [vmem:[%s5 + $0x20] sm:$0xff]
    %v246 = vld [vmem:[%s5 + $0x28] sm:$0xff]
    %v247 = vld [vmem:[%s5 + $0x30] sm:$0xff]
    %v248 = vld [vmem:[%s5 + $0x38] sm:$0xff]
    %v249 = vld [vmem:[%s5 + $0x40] sm:$0xff]
    %v250 = vld [vmem:[%s5 + $0x48] sm:$0xff]
    %v251 = vld [vmem:[%s5 + $0x50] sm:$0xff]
    %v252 = vld [vmem:[%s5 + $0x58] sm:$0xff]
    %v253 = vld [vmem:[%s5 + $0x60] sm:$0xff]
    %v254 = vld [vmem:[%s5 + $0x68] sm:$0xff]
    %v255 = vld [vmem:[%s5 + $0x70] sm:$0xff]
    %v256 = vld [vmem:[%s5 + $0x78] sm:$0xff]
    %v257 = vld [vmem:[%s5 + $0x80] sm:$0xff]
    %v258 = vld [vmem:[%s5 + $0x88] sm:$0xff]
    %v259 = vld [vmem:[%s5 + $0x90] sm:$0xff]
    %v260 = vld [vmem:[%s5 + $0x98] sm:$0xff]
    %v261 = vld [vmem:[%s5 + $0xa0] sm:$0xff]
    %v262 = vld [vmem:[%s5 + $0xa8] sm:$0xff]
    %v263 = vld [vmem:[%s5 + $0xb0] sm:$0xff]
    %v264 = vld [vmem:[%s5 + $0xb8] sm:$0xff]
    %v265 = vld [vmem:[%s5 + $0xc0] sm:$0xff]
    %v266 = vld [vmem:[%s5 + $0xc8] sm:$0xff]
    %v267 = vld [vmem:[%s5 + $0xd0] sm:$0xff]
    %v268 = vld [vmem:[%s5 + $0xd8] sm:$0xff]
    %v269 = vld [vmem:[%s5 + $0xe0] sm:$0xff]
    %v270 = vld [vmem:[%s5 + $0xe8] sm:$0xff]
    %v271 = vld [vmem:[%s5 + $0xf0] sm:$0xff]
    %v272 = vld [vmem:[%s5 + $0xf8] sm:$0xff]
    %v273 = vld [vmem:[%s6] sm:$0x1]
    %v275 = vlaneseq
    %v276 = vshrl.u32 %v275, 7
    %v277 = vsub.s32 0, %v276
    %v278 = vrot.slane %v273, %v277
    %280 = vmatprep.subr.mxu0 0.0
    %281 = vmatpush1.msra.mxu0 %v256
    %282 = vmatprep.subr.mxu0 0.0
    %283 = vmatpush1.msra.mxu0 %v255
    %284 = vmatprep.subr.mxu0 0.0
    %285 = vmatpush1.msra.mxu0 %v254
    %286 = vmatprep.subr.mxu0 0.0
    %287 = vmatpush1.msra.mxu0 %v253
    %288 = vmatprep.subr.mxu0 0.0
    %289 = vmatpush1.msra.mxu0 %v252
    %290 = vmatprep.subr.mxu0 0.0
    %291 = vmatpush1.msra.mxu0 %v251
    %292 = vmatprep.subr.mxu0 0.0
    %293 = vmatpush1.msra.mxu0 %v250
    %294 = vmatprep.subr.mxu0 0.0
    %295 = vmatpush1.msra.mxu0 %v249
    %296 = vmatprep.subr.mxu0 0.0
    %297 = vmatpush1.msra.mxu0 %v248
    %298 = vmatprep.subr.mxu0 0.0
    %299 = vmatpush1.msra.mxu0 %v247
    %300 = vmatprep.subr.mxu0 0.0
    %301 = vmatpush1.msra.mxu0 %v246
    %302 = vmatprep.subr.mxu0 0.0
    %303 = vmatpush1.msra.mxu0 %v245
    %304 = vmatprep.subr.mxu0 0.0
    %305 = vmatpush1.msra.mxu0 %v244
    %306 = vmatprep.subr.mxu0 0.0
    %307 = vmatpush1.msra.mxu0 %v243
    %308 = vmatprep.subr.mxu0 0.0
    %309 = vmatpush1.msra.mxu0 %v242
    %310 = vmatprep.subr.mxu0 0.0
    %311 = vmatpush1.msra.mxu0 %v241
    %312 = vmatprep.subr.mxu0 0.0
    %313 = vmatpush2.msra.mxu0 %v272
    %314 = vmatprep.subr.mxu0 0.0
    %315 = vmatpush2.msra.mxu0 %v271
    %316 = vmatprep.subr.mxu0 0.0
    %317 = vmatpush2.msra.mxu0 %v270
    %318 = vmatprep.subr.mxu0 0.0
    %319 = vmatpush2.msra.mxu0 %v269
    %320 = vmatprep.subr.mxu0 0.0
    %321 = vmatpush2.msra.mxu0 %v268
    %322 = vmatprep.subr.mxu0 0.0
    %323 = vmatpush2.msra.mxu0 %v267
    %324 = vmatprep.subr.mxu0 0.0
    %325 = vmatpush2.msra.mxu0 %v266
    %326 = vmatprep.subr.mxu0 0.0
    %327 = vmatpush2.msra.mxu0 %v265
    %328 = vmatprep.subr.mxu0 0.0
    %329 = vmatpush2.msra.mxu0 %v264
    %330 = vmatprep.subr.mxu0 0.0
    %331 = vmatpush2.msra.mxu0 %v263
    %332 = vmatprep.subr.mxu0 0.0
    %333 = vmatpush2.msra.mxu0 %v262
    %334 = vmatprep.subr.mxu0 0.0
    %335 = vmatpush2.msra.mxu0 %v261
    %336 = vmatprep.subr.mxu0 0.0
    %337 = vmatpush2.msra.mxu0 %v260
    %338 = vmatprep.subr.mxu0 0.0
    %339 = vmatpush2.msra.mxu0 %v259
    %340 = vmatprep.subr.mxu0 0.0
    %341 = vmatpush2.msra.mxu0 %v258
    %342 = vmatprep.subr.mxu0 0.0
    %343 = vmatpush2.msra.mxu0 %v257
    %344 = vmatprep.mubr.f32.mxu0 %v240
    %345 = vmatmul.mubr.f32.gmra.mxu0 %v239
    %v346 = vpop.f32.mrf.mxu0
    %v347 = vadd.f32 %v278, %v346
    %v348 = vpop.f32.mrf.mxu0
    %349 = vdwg.mxu0
    %v350 = vmax.f32 %v347, 0.0
    %v351 = vld [vmem:[%s7] sm:$0xff]
    %v352 = vld [vmem:[%s7 + $0x8] sm:$0xff]
    %v353 = vld [vmem:[%s7 + $0x10] sm:$0xff]
    %v354 = vld [vmem:[%s7 + $0x18] sm:$0xff]
    %v355 = vld [vmem:[%s7 + $0x20] sm:$0xff]
    %v356 = vld [vmem:[%s8] sm:$0x1]
    %v358 = vlaneseq
    %v359 = vshrl.u32 %v358, 7
    %v360 = vsub.s32 0, %v359
    %v361 = vrot.slane %v356, %v360
    %vm363 = vcmask 326656
    %v365 = vsel %vm363, %v350, 0
    %367 = vmatprep.subr.mxu0 0.0
    %368 = vmatpush1.msra.mxu0 0.0
    %369 = vmatprep.subr.mxu0 0.0
    %370 = vmatpush1.msra.mxu0 0.0
    %371 = vmatprep.subr.mxu0 0.0
    %372 = vmatpush1.msra.mxu0 0.0
    %373 = vmatprep.subr.mxu0 0.0
    %374 = vmatpush1.msra.mxu0 0.0
    %375 = vmatprep.subr.mxu0 0.0
    %376 = vmatpush1.msra.mxu0 0.0
    %377 = vmatprep.subr.mxu0 0.0
    %378 = vmatpush1.msra.mxu0 0.0
    %379 = vmatprep.subr.mxu0 0.0
    %380 = vmatpush1.msra.mxu0 0.0
    %381 = vmatprep.subr.mxu0 0.0
    %382 = vmatpush1.msra.mxu0 0.0
    %383 = vmatprep.subr.mxu0 0.0
    %384 = vmatpush1.msra.mxu0 0.0
    %385 = vmatprep.subr.mxu0 0.0
    %386 = vmatpush1.msra.mxu0 0.0
    %387 = vmatprep.subr.mxu0 0.0
    %388 = vmatpush1.msra.mxu0 0.0
    %389 = vmatprep.subr.mxu0 0.0
    %390 = vmatpush1.msra.mxu0 %v355
    %391 = vmatprep.subr.mxu0 0.0
    %392 = vmatpush1.msra.mxu0 %v354
    %393 = vmatprep.subr.mxu0 0.0
    %394 = vmatpush1.msra.mxu0 %v353
    %395 = vmatprep.subr.mxu0 0.0
    %396 = vmatpush1.msra.mxu0 %v352
    %397 = vmatprep.subr.mxu0 0.0
    %398 = vmatpush1.msra.mxu0 %v351
    %399 = vmatprep.subr.mxu0 0.0
    %400 = vmatpush2.msra.mxu0 0.0
    %401 = vmatprep.subr.mxu0 0.0
    %402 = vmatpush2.msra.mxu0 0.0
    %403 = vmatprep.subr.mxu0 0.0
    %404 = vmatpush2.msra.mxu0 0.0
    %405 = vmatprep.subr.mxu0 0.0
    %406 = vmatpush2.msra.mxu0 0.0
    %407 = vmatprep.subr.mxu0 0.0
    %408 = vmatpush2.msra.mxu0 0.0
    %409 = vmatprep.subr.mxu0 0.0
    %410 = vmatpush2.msra.mxu0 0.0
    %411 = vmatprep.subr.mxu0 0.0
    %412 = vmatpush2.msra.mxu0 0.0
    %413 = vmatprep.subr.mxu0 0.0
    %414 = vmatpush2.msra.mxu0 0.0
    %415 = vmatprep.subr.mxu0 0.0
    %416 = vmatpush2.msra.mxu0 0.0
    %417 = vmatprep.subr.mxu0 0.0
    %418 = vmatpush2.msra.mxu0 0.0
    %419 = vmatprep.subr.mxu0 0.0
    %420 = vmatpush2.msra.mxu0 0.0
    %421 = vmatprep.subr.mxu0 0.0
    %422 = vmatpush2.msra.mxu0 0.0
    %423 = vmatprep.subr.mxu0 0.0
    %424 = vmatpush2.msra.mxu0 0.0
    %425 = vmatprep.subr.mxu0 0.0
    %426 = vmatpush2.msra.mxu0 0.0
    %427 = vmatprep.subr.mxu0 0.0
    %428 = vmatpush2.msra.mxu0 0.0
    %429 = vmatprep.subr.mxu0 0.0
    %430 = vmatpush2.msra.mxu0 0.0
    %431 = vmatprep.mubr.f32.mxu0 0.0
    %432 = vmatmul.mubr.f32.gmra.mxu0 %v365
    %v433 = vpop.f32.mrf.mxu0
    %v434 = vadd.f32 %v361, %v433
    %v435 = vpop.f32.mrf.mxu0
    %436 = vdwg.mxu0
    %v437 = vmax.f32 %v434, 0.0
    %v438 = vld [vmem:[%s9] sm:$0xff]
    %v439 = vld [vmem:[%s9 + $0x8] sm:$0xff]
    %v440 = vld [vmem:[%s9 + $0x10] sm:$0xf]
    %v441 = vld [vmem:[%s10] sm:$0x1]
    %v443 = vlaneseq
    %v444 = vshrl.u32 %v443, 7
    %v445 = vsub.s32 0, %v444
    %v446 = vrot.slane %v441, %v445
    %vm448 = vcmask 162816
    %v450 = vsel %vm448, %v437, 0
    %vm452 = vcmask 1043456
    %v454 = vsel %vm452, %v440, 0
    %456 = vmatprep.subr.mxu0 0.0
    %457 = vmatpush1.msra.mxu0 0.0
    %458 = vmatprep.subr.mxu0 0.0
    %459 = vmatpush1.msra.mxu0 0.0
    %460 = vmatprep.subr.mxu0 0.0
    %461 = vmatpush1.msra.mxu0 0.0
    %462 = vmatprep.subr.mxu0 0.0
    %463 = vmatpush1.msra.mxu0 0.0
    %464 = vmatprep.subr.mxu0 0.0
    %465 = vmatpush1.msra.mxu0 0.0
    %466 = vmatprep.subr.mxu0 0.0
    %467 = vmatpush1.msra.mxu0 0.0
    %468 = vmatprep.subr.mxu0 0.0
    %469 = vmatpush1.msra.mxu0 0.0
    %470 = vmatprep.subr.mxu0 0.0
    %471 = vmatpush1.msra.mxu0 0.0
    %472 = vmatprep.subr.mxu0 0.0
    %473 = vmatpush1.msra.mxu0 0.0
    %474 = vmatprep.subr.mxu0 0.0
    %475 = vmatpush1.msra.mxu0 0.0
    %476 = vmatprep.subr.mxu0 0.0
    %477 = vmatpush1.msra.mxu0 0.0
    %478 = vmatprep.subr.mxu0 0.0
    %479 = vmatpush1.msra.mxu0 0.0
    %480 = vmatprep.subr.mxu0 0.0
    %481 = vmatpush1.msra.mxu0 0.0
    %482 = vmatprep.subr.mxu0 0.0
    %483 = vmatpush1.msra.mxu0 %v454
    %484 = vmatprep.subr.mxu0 0.0
    %485 = vmatpush1.msra.mxu0 %v439
    %486 = vmatprep.subr.mxu0 0.0
    %487 = vmatpush1.msra.mxu0 %v438
    %488 = vmatprep.subr.mxu0 0.0
    %489 = vmatpush2.msra.mxu0 0.0
    %490 = vmatprep.subr.mxu0 0.0
    %491 = vmatpush2.msra.mxu0 0.0
    %492 = vmatprep.subr.mxu0 0.0
    %493 = vmatpush2.msra.mxu0 0.0
    %494 = vmatprep.subr.mxu0 0.0
    %495 = vmatpush2.msra.mxu0 0.0
    %496 = vmatprep.subr.mxu0 0.0
    %497 = vmatpush2.msra.mxu0 0.0
    %498 = vmatprep.subr.mxu0 0.0
    %499 = vmatpush2.msra.mxu0 0.0
    %500 = vmatprep.subr.mxu0 0.0
    %501 = vmatpush2.msra.mxu0 0.0
    %502 = vmatprep.subr.mxu0 0.0
    %503 = vmatpush2.msra.mxu0 0.0
    %504 = vmatprep.subr.mxu0 0.0
    %505 = vmatpush2.msra.mxu0 0.0
    %506 = vmatprep.subr.mxu0 0.0
    %507 = vmatpush2.msra.mxu0 0.0
    %508 = vmatprep.subr.mxu0 0.0
    %509 = vmatpush2.msra.mxu0 0.0
    %510 = vmatprep.subr.mxu0 0.0
    %511 = vmatpush2.msra.mxu0 0.0
    %512 = vmatprep.subr.mxu0 0.0
    %513 = vmatpush2.msra.mxu0 0.0
    %514 = vmatprep.subr.mxu0 0.0
    %515 = vmatpush2.msra.mxu0 0.0
    %516 = vmatprep.subr.mxu0 0.0
    %517 = vmatpush2.msra.mxu0 0.0
    %518 = vmatprep.subr.mxu0 0.0
    %519 = vmatpush2.msra.mxu0 0.0
    %520 = vmatprep.mubr.f32.mxu0 0.0
    %521 = vmatmul.mubr.f32.gmra.mxu0 %v450
    %v522 = vpop.f32.mrf.mxu0
    %v523 = vadd.f32 %v446, %v522
    %v524 = vpop.f32.mrf.mxu0
    %525 = vdwg.mxu0
    %vm526 = vcmask 80896
    %v527 = vsel %vm526, %v523, -inf
    %528 = vmax.xlane.f32.xlu0 %v527
    %v529 = vpop.xlane.xlu0 %528
    %v530 = vsub.f32 %v523, %v529
    %v531 = vmul.f32 %v530, 1.442695
    %v532 = vpow.pop %v531
    %v533 = vsel %vm526, %v532, 0.0
    %534 = vadd.xlane.f32.xlu0 %v533
    %v535 = vpop.xlane.xlu0 %534
    %v536 = vrcp.pop %v535
    %v537 = vmul.f32 %v532, %v536
    %538 = vst.msk [vmem:[#allocation2] sm:$0xff] %vm526, %v537
    // Predicated region
    $region46: #{net_forward.1} parent=1 // pred_check
      _
    $region47: #{net_forward.1} parent=1 // pred_check_branch
      %540 = sbr.rel (0) target = $region49
    $region48: #{net_forward.1} parent=1 // pred_region
      %s542 = ssub.s32 128, 128
      %543 = vsyncadd [#allocation3], %s542
      %s545 = sshll.u32 [#allocation2], 4
      %s546 = int_to_ptr.vmem [resolvable:$true] %s545
      %548 = dma.vmem_to_hbm [thread:$0]  %s546, 128, %s11, [#allocation3]
    $region49: #{net_forward.1} parent=1 // pred_fallthru
      _
    // Predicated region
    $region50: #{net_forward.1} parent=1 // pred_check
      _
    $region51: #{net_forward.1} parent=1 // pred_check_branch
      %550 = sbr.rel (0) target = $region53
    $region52: #{net_forward.1} parent=1 // pred_region
      %551 = dma.done [#allocation3], 128
    $region53: #{net_forward.1} parent=1 // pred_fallthru
      _
    %552 = vsyncpa [#allocation3], 1

</llo_original>
